<compile_context>
chip_gen: v7x
topology: tpu7x:2x2x1
jax: 0.10.0
libtpu: 0.0.40
codegen_flags: <defaults>
</compile_context>

<pallas_src>
import functools

import jax
import jax.numpy as jnp
from jax.experimental import pallas as pl
from jax.experimental.pallas import tpu as pltpu

KH = KW = 3
STRIDE = 2
DIL = 2
PAD = 1

_LANE = 128
_SUBLANE = 8


def _round_up(x, m):
    return (x + m - 1) // m * m


def _gemm_bias_clamp_kernel(x_ref, w_ref, b_ref, o_ref, *, min_value, max_value):
    # Single MXU matmul per grid step, f32 accumulation.
    acc = jnp.dot(x_ref[...], w_ref[...], preferred_element_type=jnp.float32)
    acc = acc + b_ref[...]                      # bias epilogue (one broadcast)
    acc = jnp.maximum(acc, min_value)           # torch.clamp_min
    acc = jnp.minimum(acc, max_value)           # torch.clamp_max
    o_ref[...] = acc.astype(o_ref.dtype)


def conv_clamp(x_nchw, w_oihw, b, min_value=0.0, max_value=0.0,
               compute_dtype=None):
    n, cin, h, w = x_nchw.shape
    cout = w_oihw.shape[0]
    ho = (h + 2 * PAD - DIL * (KH - 1) - 1) // STRIDE + 1
    wo = (w + 2 * PAD - DIL * (KW - 1) - 1) // STRIDE + 1
    out_dtype = x_nchw.dtype

    # clamp_min(min) then clamp_max(max) collapses to a constant when
    # min >= max (module default min=max=0 -> identically zero output).
    if float(min_value) >= float(max_value):
        return jnp.full((n, cout, ho, wo), float(max_value), out_dtype)

    # ---- wrapper-side layout prep / im2col (pure XLA glue) -----------------
    # With stride=2, dilation=2, pad=1 every conv tap lands on an EVEN index
    # of the padded input: pad, keep even rows/cols, gather 3x3 shifted views.
    x_nhwc = jnp.transpose(x_nchw, (0, 2, 3, 1))
    x_pad = jnp.pad(x_nhwc, ((0, 0), (PAD, PAD), (PAD, PAD), (0, 0)))
    x_even = x_pad[:, ::STRIDE, ::STRIDE, :]                     # (n, he, we, cin)

    cols = []
    for kh in range(KH):
        for kw in range(KW):
            cols.append(x_even[:, kh:kh + ho, kw:kw + wo, :])    # (n, ho, wo, cin)
    lhs = jnp.concatenate(cols, axis=-1).reshape(n * ho * wo, KH * KW * cin)

    # OIHW -> (kh, kw, cin, cout) flattened to match the im2col concat order.
    w_mat = jnp.transpose(w_oihw, (2, 3, 1, 0)).reshape(KH * KW * cin, cout)

    if compute_dtype is not None:               # e.g. bf16 operands on v6e/v7x
        lhs = lhs.astype(compute_dtype)
        w_mat = w_mat.astype(compute_dtype)

    # ---- pad for sublane-aligned M tiles and lane-dense (128-wide) output --
    m = n * ho * wo
    k = KH * KW * cin
    cout_p = _round_up(cout, _LANE)
    tm = _round_up(m, _SUBLANE) if m <= 256 else 256
    m_p = _round_up(m, tm)

    lhs_p = jnp.pad(lhs, ((0, m_p - m), (0, 0)))
    w_p = jnp.pad(w_mat, ((0, 0), (0, cout_p - cout)))
    b_p = jnp.pad(b.astype(jnp.float32).reshape(1, cout),
                  ((0, 0), (0, cout_p - cout)))

    kernel = functools.partial(_gemm_bias_clamp_kernel,
                               min_value=float(min_value),
                               max_value=float(max_value))

    out_p = pl.pallas_call(
        kernel,
        out_shape=jax.ShapeDtypeStruct((m_p, cout_p), out_dtype),
        grid_spec=pltpu.PrefetchScalarGridSpec(
            num_scalar_prefetch=0,
            grid=(m_p // tm,),
            in_specs=[
                pl.BlockSpec((tm, k), lambda i: (i, 0)),
                pl.BlockSpec((k, cout_p), lambda i: (0, 0)),
                pl.BlockSpec((1, cout_p), lambda i: (0, 0)),
            ],
            out_specs=pl.BlockSpec((tm, cout_p), lambda i: (i, 0)),
        ),
        compiler_params=pltpu.CompilerParams(
            dimension_semantics=("parallel",)),
    )(lhs_p, w_p, b_p)

    out = out_p[:m, :cout].reshape(n, ho, wo, cout)
    return jnp.transpose(out, (0, 3, 1, 2))                      # back to NCHW


def _reference(x, w, b, min_value, max_value):
    y = jax.lax.conv_general_dilated(
        x, w, window_strides=(STRIDE, STRIDE),
        padding=((PAD, PAD), (PAD, PAD)),
        rhs_dilation=(DIL, DIL),
        dimension_numbers=("NCHW", "OIHW", "NCHW"))
    y = y + b.reshape(1, -1, 1, 1)
    return jnp.minimum(jnp.maximum(y, min_value), max_value)


if __name__ == "__main__":
    key = jax.random.PRNGKey(0)
    k1, k2, k3 = jax.random.split(key, 3)

    # Small shapes consistent with the module (Conv2d fixes Cin=Cout=32).
    N, C, H, W = 2, 32, 16, 16
    x = jax.random.normal(k1, (N, C, H, W), dtype=jnp.float32)

    fan_in = C * KH * KW
    bound = 1.0 / (fan_in ** 0.5)
    w = jax.random.uniform(k2, (32, 32, KH, KW), jnp.float32, -bound, bound)
    b = jax.random.uniform(k3, (32,), jnp.float32, -bound, bound)

    # Exercise the conv+clamp kernel path with non-degenerate clamp bounds.
    out_f32 = jax.block_until_ready(conv_clamp(x, w, b, -1.0, 1.0))
    ref = _reference(x, w, b, -1.0, 1.0)
    assert out_f32.shape == ref.shape == (N, 32, 7, 7)
    assert jnp.allclose(out_f32, ref, atol=5e-4), "f32 conv mismatch"

    # bf16 MXU operands (v6e/v7x fast path), f32 accumulation.
    out_bf16 = jax.block_until_ready(
        conv_clamp(x, w, b, -1.0, 1.0, compute_dtype=jnp.bfloat16))
    assert jnp.allclose(out_bf16, ref, atol=3e-2), "bf16 conv mismatch"

    # Module semantics: min_value=0, max_value=0 (defaults) -> output is
    # identically zero; short-circuited in the wrapper.
    out0 = jax.block_until_ready(conv_clamp(x, w, b, 0.0, 0.0))
    ref0 = _reference(x, w, b, 0.0, 0.0)
    assert out0.shape == (N, 32, 7, 7)
    assert jnp.allclose(out0, ref0, atol=1e-6)

    print("KERNEL_OK")
</pallas_src>

<mosaic_0001>
module attributes {stable_mosaic.version = 11 : i64} {
  func.func @_gemm_bias_clamp_kernel(%arg0: i32, %arg1: memref<104x288xf32, #tpu.memory_space<vmem>>, %arg2: memref<288x128xf32, #tpu.memory_space<vmem>>, %arg3: memref<1x128xf32, #tpu.memory_space<vmem>>, %arg4: memref<104x128xf32, #tpu.memory_space<vmem>>) attributes {dimension_semantics = [#tpu.dimension_semantics<parallel>], iteration_bounds = array<i64: 1>, scalar_prefetch = 0 : i64, scratch_operands = 0 : i64, tpu.core_type = #tpu.core_type<tc>, window_params = [{transform_indices = @transform_0, window_bounds = array<i64: 104, 288>}, {pipeline_mode = #tpu.pipeline_mode<synchronous>, transform_indices = @transform_1, window_bounds = array<i64: 288, 128>}, {pipeline_mode = #tpu.pipeline_mode<synchronous>, transform_indices = @transform_2, window_bounds = array<i64: 1, 128>}, {transform_indices = @transform_3, window_bounds = array<i64: 104, 128>}]} {
    %c0 = arith.constant 0 : index
    %c0_0 = arith.constant 0 : index
    %0 = vector.load %arg1[%c0, %c0_0] : memref<104x288xf32, #tpu.memory_space<vmem>>, vector<104x288xf32>
    %c0_1 = arith.constant 0 : index
    %c0_2 = arith.constant 0 : index
    %1 = vector.load %arg2[%c0_1, %c0_2] : memref<288x128xf32, #tpu.memory_space<vmem>>, vector<288x128xf32>
    %cst = arith.constant dense<0.000000e+00> : vector<104x128xf32>
    %2 = tpu.matmul %0, %1, %cst {dimension_numbers = #tpu.dot_dimension_numbers<[1], [0], [0], [1], [0, 0, 1, 1], [], []>} : vector<104x288xf32>, vector<288x128xf32>, vector<104x128xf32> -> vector<104x128xf32>
    %c0_3 = arith.constant 0 : index
    %c0_4 = arith.constant 0 : index
    %3 = vector.load %arg3[%c0_3, %c0_4] : memref<1x128xf32, #tpu.memory_space<vmem>>, vector<1x128xf32>
    %4 = vector.broadcast %3 : vector<1x128xf32> to vector<104x128xf32>
    %5 = arith.addf %2, %4 : vector<104x128xf32>
    %cst_5 = arith.constant -1.000000e+00 : f32
    %6 = vector.broadcast %cst_5 : f32 to vector<104x128xf32>
    %7 = arith.maximumf %5, %6 : vector<104x128xf32>
    %cst_6 = arith.constant 1.000000e+00 : f32
    %8 = vector.broadcast %cst_6 : f32 to vector<104x128xf32>
    %9 = arith.minimumf %7, %8 : vector<104x128xf32>
    %c0_7 = arith.constant 0 : index
    %c0_8 = arith.constant 0 : index
    %10 = vector.load %arg4[%c0_7, %c0_8] : memref<104x128xf32, #tpu.memory_space<vmem>>, vector<104x128xf32>
    tpu.vector_store %arg4[%c0_7, %c0_8], %9 {strides = array<i32>} : memref<104x128xf32, #tpu.memory_space<vmem>>, vector<104x128xf32>,
    return
  }
  func.func @transform_0(%arg0: i32) -> (i32, i32) {
    %c0_i32 = arith.constant 0 : i32
    %c0_i32_0 = arith.constant 0 : i32
    return %arg0, %c0_i32 : i32, i32
  }
  func.func @transform_1(%arg0: i32) -> (i32, i32) {
    %c0_i32 = arith.constant 0 : i32
    %c0_i32_0 = arith.constant 0 : i32
    %c0_i32_1 = arith.constant 0 : i32
    return %c0_i32, %c0_i32_0 : i32, i32
  }
  func.func @transform_2(%arg0: i32) -> (i32, i32) {
    %c0_i32 = arith.constant 0 : i32
    %c0_i32_0 = arith.constant 0 : i32
    %c0_i32_1 = arith.constant 0 : i32
    return %c0_i32, %c0_i32_0 : i32, i32
  }
  func.func @transform_3(%arg0: i32) -> (i32, i32) {
    %c0_i32 = arith.constant 0 : i32
    %c0_i32_0 = arith.constant 0 : i32
    return %arg0, %c0_i32 : i32, i32
  }
}

</mosaic_0001>

<llo_original>
// kernel: tpu_custom_call.1
$region0: #{tpu_custom_call.1}
  #allocation0 [shape = 'u32[]', space=smem, size = 0x4, offset = 0x4, fixed_abs, tag = 'smem constant byte address 0x4 - core index']
  #allocation1 [shape = 'u32[144,128]{1,0:T(1,128)}', space=vmem, size = 0x12000, scoped, tag = 'internal scratch']
  %s0 = inlined_call_operand.vmem [shape: f32[104,288], index: 0, kind: input, shape index: {}]
  %s1 = inlined_call_operand.vmem [shape: f32[288,128], index: 1, kind: input, shape index: {}]
  %s2 = inlined_call_operand.vmem [shape: f32[1,128], index: 2, kind: input, shape index: {}]
  %s3 = inlined_call_operand.hbm [shape: f32[104,128], index: 3, kind: output, shape index: {}]
  %s4 = sld [smem:[#allocation0]]
  $region22: #{tpu_custom_call.1} parent=0
    _
  %s6 = ssub.s32 1, %s4
  %s7 = scalar_select 0, %s6, %s4
  $region1: #{tpu_custom_call.1} parent=0
    #allocation2 [shape = 'u8[53248]{0}', space=vmem, size = 0xd000, scoped, tag = 'output window, operand 0, single buffered']
    #allocation3 [shape = 's32[1]{0}', space=sflag, size = 0x4, scoped, tag = 'scoped memory for tpu_custom_call.1']
    %8 = vsyncpa [#allocation3], 0
    // Predicated region
    $region2: #{tpu_custom_call.1} parent=1 // pred_check
      _
    $region3: #{tpu_custom_call.1} parent=1 // pred_check_branch
      %10 = sbr.rel (0) target = $region5
    $region4: #{tpu_custom_call.1} parent=1 // pred_region
      _
    $region5: #{tpu_custom_call.1} parent=1 // pred_fallthru
      _
    // Predicated region
    $region6: #{tpu_custom_call.1} parent=1 // pred_check
      _
    $region7: #{tpu_custom_call.1} parent=1 // pred_check_branch
      %12 = sbr.rel (0) target = $region9
    $region8: #{tpu_custom_call.1} parent=1 // pred_region
      _
    $region9: #{tpu_custom_call.1} parent=1 // pred_fallthru
      _
    // Predicated region
    $region10: #{tpu_custom_call.1} parent=1 // pred_check
      _
    $region11: #{tpu_custom_call.1} parent=1 // pred_check_branch
      %14 = sbr.rel (0) target = $region13
    $region12: #{tpu_custom_call.1} parent=1 // pred_region
      _
    $region13: #{tpu_custom_call.1} parent=1 // pred_fallthru
      _
    %v15 = vld [vmem:[%s0] sm:$0xff]
    %v16 = vld [vmem:[%s0 + $0x8] sm:$0xff]
    %v17 = vld [vmem:[%s0 + $0x10] sm:$0xff]
    %v18 = vld [vmem:[%s0 + $0x18] sm:$0xff]
    %v19 = vld [vmem:[%s0 + $0x20] sm:$0xff]
    %v20 = vld [vmem:[%s0 + $0x28] sm:$0xff]
    %v21 = vld [vmem:[%s0 + $0x30] sm:$0xff]
    %v22 = vld [vmem:[%s0 + $0x38] sm:$0xff]
    %v23 = vld [vmem:[%s0 + $0x40] sm:$0xff]
    %v24 = vld [vmem:[%s0 + $0x48] sm:$0xff]
    %v25 = vld [vmem:[%s0 + $0x50] sm:$0xff]
    %v26 = vld [vmem:[%s0 + $0x58] sm:$0xff]
    %v27 = vld [vmem:[%s0 + $0x60] sm:$0xff]
    %v28 = vld [vmem:[%s0 + $0x68] sm:$0xff]
    %v29 = vld [vmem:[%s0 + $0x70] sm:$0xff]
    %v30 = vld [vmem:[%s0 + $0x78] sm:$0xff]
    %v31 = vld [vmem:[%s0 + $0x80] sm:$0xff]
    %v32 = vld [vmem:[%s0 + $0x88] sm:$0xff]
    %v33 = vld [vmem:[%s0 + $0x90] sm:$0xff]
    %v34 = vld [vmem:[%s0 + $0x98] sm:$0xff]
    %v35 = vld [vmem:[%s0 + $0xa0] sm:$0xff]
    %v36 = vld [vmem:[%s0 + $0xa8] sm:$0xff]
    %v37 = vld [vmem:[%s0 + $0xb0] sm:$0xff]
    %v38 = vld [vmem:[%s0 + $0xb8] sm:$0xff]
    %v39 = vld [vmem:[%s0 + $0xc0] sm:$0xff]
    %v40 = vld [vmem:[%s0 + $0xc8] sm:$0xff]
    %v41 = vld [vmem:[%s0 + $0xd0] sm:$0xff]
    %v42 = vld [vmem:[%s0 + $0xd8] sm:$0xff]
    %v43 = vld [vmem:[%s0 + $0xe0] sm:$0xff]
    %v44 = vld [vmem:[%s0 + $0xe8] sm:$0xff]
    %v45 = vld [vmem:[%s0 + $0xf0] sm:$0xff]
    %v46 = vld [vmem:[%s0 + $0xf8] sm:$0xff]
    %v47 = vld [vmem:[%s0 + $0x100] sm:$0xff]
    %v48 = vld [vmem:[%s0 + $0x108] sm:$0xff]
    %v49 = vld [vmem:[%s0 + $0x110] sm:$0xff]
    %v50 = vld [vmem:[%s0 + $0x118] sm:$0xff]
    %v51 = vld [vmem:[%s0 + $0x120] sm:$0xff]
    %v52 = vld [vmem:[%s0 + $0x128] sm:$0xff]
    %v53 = vld [vmem:[%s0 + $0x130] sm:$0xff]
    %v54 = vld [vmem:[%s1] sm:$0xff]
    %v55 = vld [vmem:[%s1 + $0x8] sm:$0xff]
    %v56 = vld [vmem:[%s1 + $0x10] sm:$0xff]
    %v57 = vld [vmem:[%s1 + $0x18] sm:$0xff]
    %v58 = vld [vmem:[%s1 + $0x20] sm:$0xff]
    %v59 = vld [vmem:[%s1 + $0x28] sm:$0xff]
    %v60 = vld [vmem:[%s1 + $0x30] sm:$0xff]
    %v61 = vld [vmem:[%s1 + $0x38] sm:$0xff]
    %v62 = vld [vmem:[%s1 + $0x40] sm:$0xff]
    %v63 = vld [vmem:[%s1 + $0x48] sm:$0xff]
    %v64 = vld [vmem:[%s1 + $0x50] sm:$0xff]
    %v65 = vld [vmem:[%s1 + $0x58] sm:$0xff]
    %v66 = vld [vmem:[%s1 + $0x60] sm:$0xff]
    %v67 = vld [vmem:[%s1 + $0x68] sm:$0xff]
    %v68 = vld [vmem:[%s1 + $0x70] sm:$0xff]
    %v69 = vld [vmem:[%s1 + $0x78] sm:$0xff]
    %v70 = vld [vmem:[%s1 + $0x80] sm:$0xff]
    %v71 = vld [vmem:[%s1 + $0x88] sm:$0xff]
    %v72 = vld [vmem:[%s1 + $0x90] sm:$0xff]
    %v73 = vld [vmem:[%s1 + $0x98] sm:$0xff]
    %v74 = vld [vmem:[%s1 + $0xa0] sm:$0xff]
    %v75 = vld [vmem:[%s1 + $0xa8] sm:$0xff]
    %v76 = vld [vmem:[%s1 + $0xb0] sm:$0xff]
    %v77 = vld [vmem:[%s1 + $0xb8] sm:$0xff]
    %v78 = vld [vmem:[%s1 + $0xc0] sm:$0xff]
    %v79 = vld [vmem:[%s1 + $0xc8] sm:$0xff]
    %v80 = vld [vmem:[%s1 + $0xd0] sm:$0xff]
    %v81 = vld [vmem:[%s1 + $0xd8] sm:$0xff]
    %v82 = vld [vmem:[%s1 + $0xe0] sm:$0xff]
    %v83 = vld [vmem:[%s1 + $0xe8] sm:$0xff]
    %v84 = vld [vmem:[%s1 + $0xf0] sm:$0xff]
    %v85 = vld [vmem:[%s1 + $0xf8] sm:$0xff]
    %v86 = vld [vmem:[%s1 + $0x100] sm:$0xff]
    %v87 = vld [vmem:[%s1 + $0x108] sm:$0xff]
    %v88 = vld [vmem:[%s1 + $0x110] sm:$0xff]
    %v89 = vld [vmem:[%s1 + $0x118] sm:$0xff]
    %v90 = vld [vmem:[%s2] sm:$0x1]
    %v92 = vlaneseq
    %v93 = vshrl.u32 %v92, 7
    %v94 = vsub.s32 0, %v93
    %v95 = vrot.slane %v90, %v94
    %vm97 = vcmask 261120
    %v99 = vsel %vm97, %v17, 0
    %v102 = vsel %vm97, %v20, 0
    %v105 = vsel %vm97, %v23, 0
    %v108 = vsel %vm97, %v26, 0
    %v111 = vsel %vm97, %v29, 0
    %v114 = vsel %vm97, %v32, 0
    %v117 = vsel %vm97, %v35, 0
    %v120 = vsel %vm97, %v38, 0
    %v123 = vsel %vm97, %v41, 0
    %v126 = vsel %vm97, %v44, 0
    %v129 = vsel %vm97, %v47, 0
    %v132 = vsel %vm97, %v50, 0
    %v135 = vsel %vm97, %v53, 0
    %137 = vmatprep.subr.mxu0 0.0
    %138 = vmatpush1.msra.mxu0 %v54
    %139 = vmatprep.subr.mxu0 0.0
    %140 = vmatpush1.msra.mxu0 %v55
    %141 = vmatprep.subr.mxu0 0.0
    %142 = vmatpush1.msra.mxu0 %v56
    %143 = vmatprep.subr.mxu0 0.0
    %144 = vmatpush1.msra.mxu0 %v57
    %145 = vmatprep.subr.mxu0 0.0
    %146 = vmatpush1.msra.mxu0 %v58
    %147 = vmatprep.subr.mxu0 0.0
    %148 = vmatpush1.msra.mxu0 %v59
    %149 = vmatprep.subr.mxu0 0.0
    %150 = vmatpush1.msra.mxu0 %v60
    %151 = vmatprep.subr.mxu0 0.0
    %152 = vmatpush1.msra.mxu0 %v61
    %153 = vmatprep.subr.mxu0 0.0
    %154 = vmatpush1.msra.mxu0 %v62
    %155 = vmatprep.subr.mxu0 0.0
    %156 = vmatpush1.msra.mxu0 %v63
    %157 = vmatprep.subr.mxu0 0.0
    %158 = vmatpush1.msra.mxu0 %v64
    %159 = vmatprep.subr.mxu0 0.0
    %160 = vmatpush1.msra.mxu0 %v65
    %161 = vmatprep.subr.mxu0 0.0
    %162 = vmatpush1.msra.mxu0 %v66
    %163 = vmatprep.subr.mxu0 0.0
    %164 = vmatpush1.msra.mxu0 %v67
    %165 = vmatprep.subr.mxu0 0.0
    %166 = vmatpush1.msra.mxu0 %v68
    %167 = vmatprep.subr.mxu0 0.0
    %168 = vmatpush1.msra.mxu0 %v69
    %169 = vmatprep.subr.mxu0 0.0
    %170 = vmatpush1.msra.mxu0 %v70
    %171 = vmatprep.subr.mxu0 0.0
    %172 = vmatpush1.msra.mxu0 %v71
    %173 = vmatprep.subr.mxu0 0.0
    %174 = vmatpush1.msra.mxu0 %v72
    %175 = vmatprep.subr.mxu0 0.0
    %176 = vmatpush1.msra.mxu0 %v73
    %177 = vmatprep.subr.mxu0 0.0
    %178 = vmatpush1.msra.mxu0 %v74
    %179 = vmatprep.subr.mxu0 0.0
    %180 = vmatpush1.msra.mxu0 %v75
    %181 = vmatprep.subr.mxu0 0.0
    %182 = vmatpush1.msra.mxu0 %v76
    %183 = vmatprep.subr.mxu0 0.0
    %184 = vmatpush1.msra.mxu0 %v77
    %185 = vmatprep.subr.mxu0 0.0
    %186 = vmatpush1.msra.mxu0 %v78
    %187 = vmatprep.subr.mxu0 0.0
    %188 = vmatpush1.msra.mxu0 %v79
    %189 = vmatprep.subr.mxu0 0.0
    %190 = vmatpush1.msra.mxu0 %v80
    %191 = vmatprep.subr.mxu0 0.0
    %192 = vmatpush1.msra.mxu0 %v81
    %193 = vmatprep.subr.mxu0 0.0
    %194 = vmatpush1.msra.mxu0 %v82
    %195 = vmatprep.subr.mxu0 0.0
    %196 = vmatpush1.msra.mxu0 %v83
    %197 = vmatprep.subr.mxu0 0.0
    %198 = vmatpush1.msra.mxu0 %v84
    %199 = vmatprep.subr.mxu0 0.0
    %200 = vmatpush1.msra.mxu0 %v85
    %201 = vmatprep.mubr.f32.mxu0 %v16
    %202 = vmatmul.mubr.f32.gmra.mrb[0].mxu0 %v15
    %v203 = vpop.f32.mrb[0].mxu0
    %v204 = vadd.f32 %v95, %v203
    %v205 = vpop.f32.mrb[0].mxu0
    %206 = vmatprep.mubr.f32.mxu0 %v19
    %207 = vmatmul.mubr.f32.gmra.mrb[0].mxu0 %v18
    %v208 = vpop.f32.mrb[0].mxu0
    %v209 = vadd.f32 %v95, %v208
    %v210 = vpop.f32.mrb[0].mxu0
    %211 = vmatprep.mubr.f32.mxu0 %v22
    %212 = vmatmul.mubr.f32.gmra.mrb[0].mxu0 %v21
    %v213 = vpop.f32.mrb[0].mxu0
    %v214 = vadd.f32 %v95, %v213
    %v215 = vpop.f32.mrb[0].mxu0
    %216 = vmatprep.mubr.f32.mxu0 %v25
    %217 = vmatmul.mubr.f32.gmra.mrb[0].mxu0 %v24
    %v218 = vpop.f32.mrb[0].mxu0
    %v219 = vadd.f32 %v95, %v218
    %v220 = vpop.f32.mrb[0].mxu0
    %221 = vmatprep.mubr.f32.mxu0 %v28
    %222 = vmatmul.mubr.f32.gmra.mrb[0].mxu0 %v27
    %v223 = vpop.f32.mrb[0].mxu0
    %v224 = vadd.f32 %v95, %v223
    %v225 = vpop.f32.mrb[0].mxu0
    %226 = vmatprep.mubr.f32.mxu0 %v31
    %227 = vmatmul.mubr.f32.gmra.mrb[0].mxu0 %v30
    %v228 = vpop.f32.mrb[0].mxu0
    %v229 = vadd.f32 %v95, %v228
    %v230 = vpop.f32.mrb[0].mxu0
    %231 = vmatprep.mubr.f32.mxu0 %v34
    %232 = vmatmul.mubr.f32.gmra.mrb[0].mxu0 %v33
    %v233 = vpop.f32.mrb[0].mxu0
    %v234 = vadd.f32 %v95, %v233
    %v235 = vpop.f32.mrb[0].mxu0
    %236 = vmatprep.mubr.f32.mxu0 %v37
    %237 = vmatmul.mubr.f32.gmra.mrb[0].mxu0 %v36
    %v238 = vpop.f32.mrb[0].mxu0
    %v239 = vadd.f32 %v95, %v238
    %v240 = vpop.f32.mrb[0].mxu0
    %241 = vmatprep.mubr.f32.mxu0 %v40
    %242 = vmatmul.mubr.f32.gmra.mrb[0].mxu0 %v39
    %v243 = vpop.f32.mrb[0].mxu0
    %v244 = vadd.f32 %v95, %v243
    %v245 = vpop.f32.mrb[0].mxu0
    %246 = vmatprep.mubr.f32.mxu0 %v43
    %247 = vmatmul.mubr.f32.gmra.mrb[0].mxu0 %v42
    %v248 = vpop.f32.mrb[0].mxu0
    %v249 = vadd.f32 %v95, %v248
    %v250 = vpop.f32.mrb[0].mxu0
    %251 = vmatprep.mubr.f32.mxu0 %v46
    %252 = vmatmul.mubr.f32.gmra.mrb[0].mxu0 %v45
    %v253 = vpop.f32.mrb[0].mxu0
    %v254 = vadd.f32 %v95, %v253
    %v255 = vpop.f32.mrb[0].mxu0
    %256 = vmatprep.mubr.f32.mxu0 %v49
    %257 = vmatmul.mubr.f32.gmra.mrb[0].mxu0 %v48
    %v258 = vpop.f32.mrb[0].mxu0
    %v259 = vadd.f32 %v95, %v258
    %v260 = vpop.f32.mrb[0].mxu0
    %261 = vmatprep.mubr.f32.mxu0 %v52
    %262 = vmatmul.mubr.f32.gmra.mrb[0].mxu0 %v51
    %v263 = vpop.f32.mrb[0].mxu0
    %v264 = vadd.f32 %v95, %v263
    %v265 = vpop.f32.mrb[0].mxu0
    %266 = vdwg.mxu0
    %267 = vmatprep.subr.mxu0 0.0
    %268 = vmatpush1.msra.mxu0 %v86
    %269 = vmatprep.subr.mxu0 0.0
    %270 = vmatpush1.msra.mxu0 %v87
    %271 = vmatprep.subr.mxu0 0.0
    %272 = vmatpush1.msra.mxu0 %v88
    %273 = vmatprep.subr.mxu0 0.0
    %274 = vmatpush1.msra.mxu0 %v89
    %275 = vmatprep.subr.mxu0 0.0
    %276 = vmatpush1.msra.mxu0 0.0
    %277 = vmatprep.subr.mxu0 0.0
    %278 = vmatpush1.msra.mxu0 0.0
    %279 = vmatprep.subr.mxu0 0.0
    %280 = vmatpush1.msra.mxu0 0.0
    %281 = vmatprep.subr.mxu0 0.0
    %282 = vmatpush1.msra.mxu0 0.0
    %283 = vmatprep.subr.mxu0 0.0
    %284 = vmatpush1.msra.mxu0 0.0
    %285 = vmatprep.subr.mxu0 0.0
    %286 = vmatpush1.msra.mxu0 0.0
    %287 = vmatprep.subr.mxu0 0.0
    %288 = vmatpush1.msra.mxu0 0.0
    %289 = vmatprep.subr.mxu0 0.0
    %290 = vmatpush1.msra.mxu0 0.0
    %291 = vmatprep.subr.mxu0 0.0
    %292 = vmatpush1.msra.mxu0 0.0
    %293 = vmatprep.subr.mxu0 0.0
    %294 = vmatpush1.msra.mxu0 0.0
    %295 = vmatprep.subr.mxu0 0.0
    %296 = vmatpush1.msra.mxu0 0.0
    %297 = vmatprep.subr.mxu0 0.0
    %298 = vmatpush1.msra.mxu0 0.0
    %299 = vmatprep.subr.mxu0 0.0
    %300 = vmatpush1.msra.mxu0 0.0
    %301 = vmatprep.subr.mxu0 0.0
    %302 = vmatpush1.msra.mxu0 0.0
    %303 = vmatprep.subr.mxu0 0.0
    %304 = vmatpush1.msra.mxu0 0.0
    %305 = vmatprep.subr.mxu0 0.0
    %306 = vmatpush1.msra.mxu0 0.0
    %307 = vmatprep.subr.mxu0 0.0
    %308 = vmatpush1.msra.mxu0 0.0
    %309 = vmatprep.subr.mxu0 0.0
    %310 = vmatpush1.msra.mxu0 0.0
    %311 = vmatprep.subr.mxu0 0.0
    %312 = vmatpush1.msra.mxu0 0.0
    %313 = vmatprep.subr.mxu0 0.0
    %314 = vmatpush1.msra.mxu0 0.0
    %315 = vmatprep.subr.mxu0 0.0
    %316 = vmatpush1.msra.mxu0 0.0
    %317 = vmatprep.subr.mxu0 0.0
    %318 = vmatpush1.msra.mxu0 0.0
    %319 = vmatprep.subr.mxu0 0.0
    %320 = vmatpush1.msra.mxu0 0.0
    %321 = vmatprep.subr.mxu0 0.0
    %322 = vmatpush1.msra.mxu0 0.0
    %323 = vmatprep.subr.mxu0 0.0
    %324 = vmatpush1.msra.mxu0 0.0
    %325 = vmatprep.subr.mxu0 0.0
    %326 = vmatpush1.msra.mxu0 0.0
    %327 = vmatprep.subr.mxu0 0.0
    %328 = vmatpush1.msra.mxu0 0.0
    %329 = vmatprep.subr.mxu0 0.0
    %330 = vmatpush1.msra.mxu0 0.0
    %331 = vmatprep.mubr.f32.mxu0 0.0
    %332 = vmatmul.mubr.f32.gmra.mrb[0].mxu0 %v99
    %v333 = vpop.f32.mrb[0].mxu0
    %v334 = vadd.f32 %v204, %v333
    %v335 = vpop.f32.mrb[0].mxu0
    %336 = vmatprep.mubr.f32.mxu0 0.0
    %337 = vmatmul.mubr.f32.gmra.mrb[0].mxu0 %v102
    %v338 = vpop.f32.mrb[0].mxu0
    %v339 = vadd.f32 %v209, %v338
    %v340 = vpop.f32.mrb[0].mxu0
    %341 = vmatprep.mubr.f32.mxu0 0.0
    %342 = vmatmul.mubr.f32.gmra.mrb[0].mxu0 %v105
    %v343 = vpop.f32.mrb[0].mxu0
    %v344 = vadd.f32 %v214, %v343
    %v345 = vpop.f32.mrb[0].mxu0
    %346 = vmatprep.mubr.f32.mxu0 0.0
    %347 = vmatmul.mubr.f32.gmra.mrb[0].mxu0 %v108
    %v348 = vpop.f32.mrb[0].mxu0
    %v349 = vadd.f32 %v219, %v348
    %v350 = vpop.f32.mrb[0].mxu0
    %351 = vmatprep.mubr.f32.mxu0 0.0
    %352 = vmatmul.mubr.f32.gmra.mrb[0].mxu0 %v111
    %v353 = vpop.f32.mrb[0].mxu0
    %v354 = vadd.f32 %v224, %v353
    %v355 = vpop.f32.mrb[0].mxu0
    %356 = vmatprep.mubr.f32.mxu0 0.0
    %357 = vmatmul.mubr.f32.gmra.mrb[0].mxu0 %v114
    %v358 = vpop.f32.mrb[0].mxu0
    %v359 = vadd.f32 %v229, %v358
    %v360 = vpop.f32.mrb[0].mxu0
    %361 = vmatprep.mubr.f32.mxu0 0.0
    %362 = vmatmul.mubr.f32.gmra.mrb[0].mxu0 %v117
    %v363 = vpop.f32.mrb[0].mxu0
    %v364 = vadd.f32 %v234, %v363
    %v365 = vpop.f32.mrb[0].mxu0
    %366 = vmatprep.mubr.f32.mxu0 0.0
    %367 = vmatmul.mubr.f32.gmra.mrb[0].mxu0 %v120
    %v368 = vpop.f32.mrb[0].mxu0
    %v369 = vadd.f32 %v239, %v368
    %v370 = vpop.f32.mrb[0].mxu0
    %371 = vmatprep.mubr.f32.mxu0 0.0
    %372 = vmatmul.mubr.f32.gmra.mrb[0].mxu0 %v123
    %v373 = vpop.f32.mrb[0].mxu0
    %v374 = vadd.f32 %v244, %v373
    %v375 = vpop.f32.mrb[0].mxu0
    %376 = vmatprep.mubr.f32.mxu0 0.0
    %377 = vmatmul.mubr.f32.gmra.mrb[0].mxu0 %v126
    %v378 = vpop.f32.mrb[0].mxu0
    %v379 = vadd.f32 %v249, %v378
    %v380 = vpop.f32.mrb[0].mxu0
    %381 = vmatprep.mubr.f32.mxu0 0.0
    %382 = vmatmul.mubr.f32.gmra.mrb[0].mxu0 %v129
    %v383 = vpop.f32.mrb[0].mxu0
    %v384 = vadd.f32 %v254, %v383
    %v385 = vpop.f32.mrb[0].mxu0
    %386 = vmatprep.mubr.f32.mxu0 0.0
    %387 = vmatmul.mubr.f32.gmra.mrb[0].mxu0 %v132
    %v388 = vpop.f32.mrb[0].mxu0
    %v389 = vadd.f32 %v259, %v388
    %v390 = vpop.f32.mrb[0].mxu0
    %391 = vmatprep.mubr.f32.mxu0 0.0
    %392 = vmatmul.mubr.f32.gmra.mrb[0].mxu0 %v135
    %v393 = vpop.f32.mrb[0].mxu0
    %v394 = vadd.f32 %v264, %v393
    %v395 = vpop.f32.mrb[0].mxu0
    %396 = vdwg.mxu0
    %v397 = vmax.f32 %v334, -1.0
    %v398 = vmax.f32 %v339, -1.0
    %v399 = vmax.f32 %v344, -1.0
    %v400 = vmax.f32 %v349, -1.0
    %v401 = vmax.f32 %v354, -1.0
    %v402 = vmax.f32 %v359, -1.0
    %v403 = vmax.f32 %v364, -1.0
    %v404 = vmax.f32 %v369, -1.0
    %v405 = vmax.f32 %v374, -1.0
    %v406 = vmax.f32 %v379, -1.0
    %v407 = vmax.f32 %v384, -1.0
    %v408 = vmax.f32 %v389, -1.0
    %v409 = vmax.f32 %v394, -1.0
    %v410 = vmin.f32 %v397, 1.0
    %v411 = vmin.f32 %v398, 1.0
    %v412 = vmin.f32 %v399, 1.0
    %v413 = vmin.f32 %v400, 1.0
    %v414 = vmin.f32 %v401, 1.0
    %v415 = vmin.f32 %v402, 1.0
    %v416 = vmin.f32 %v403, 1.0
    %v417 = vmin.f32 %v404, 1.0
    %v418 = vmin.f32 %v405, 1.0
    %v419 = vmin.f32 %v406, 1.0
    %v420 = vmin.f32 %v407, 1.0
    %v421 = vmin.f32 %v408, 1.0
    %v422 = vmin.f32 %v409, 1.0
    %423 = vst [vmem:[#allocation2] sm:$0xff] %v410
    %424 = vst [vmem:[#allocation2 + $0x8] sm:$0xff] %v411
    %425 = vst [vmem:[#allocation2 + $0x10] sm:$0xff] %v412
    %426 = vst [vmem:[#allocation2 + $0x18] sm:$0xff] %v413
    %427 = vst [vmem:[#allocation2 + $0x20] sm:$0xff] %v414
    %428 = vst [vmem:[#allocation2 + $0x28] sm:$0xff] %v415
    %429 = vst [vmem:[#allocation2 + $0x30] sm:$0xff] %v416
    %430 = vst [vmem:[#allocation2 + $0x38] sm:$0xff] %v417
    %431 = vst [vmem:[#allocation2 + $0x40] sm:$0xff] %v418
    %432 = vst [vmem:[#allocation2 + $0x48] sm:$0xff] %v419
    %433 = vst [vmem:[#allocation2 + $0x50] sm:$0xff] %v420
    %434 = vst [vmem:[#allocation2 + $0x58] sm:$0xff] %v421
    %435 = vst [vmem:[#allocation2 + $0x60] sm:$0xff] %v422
    // Predicated region
    $region14: #{tpu_custom_call.1} parent=1 // pred_check
      _
    $region15: #{tpu_custom_call.1} parent=1 // pred_check_branch
      %437 = sbr.rel (0) target = $region17
    $region16: #{tpu_custom_call.1} parent=1 // pred_region
      %s439 = ssub.s32 1664, 1664
      %440 = vsyncadd [#allocation3], %s439
      %s441 = sshll.u32 [#allocation2], 4
      %s442 = int_to_ptr.vmem [resolvable:$true] %s441
      %447 = dma.vmem_to_hbm [thread:$0]  %s442, 1664, %s3, [#allocation3], 128, 128, 8
    $region17: #{tpu_custom_call.1} parent=1 // pred_fallthru
      _
    // Predicated region
    $region18: #{tpu_custom_call.1} parent=1 // pred_check
      _
    $region19: #{tpu_custom_call.1} parent=1 // pred_check_branch
      %449 = sbr.rel (0) target = $region21
    $region20: #{tpu_custom_call.1} parent=1 // pred_region
      %450 = dma.done [#allocation3], 1664
    $region21: #{tpu_custom_call.1} parent=1 // pred_fallthru
      _
    %451 = vsyncpa [#allocation3], 1

</llo_original>
